<compile_context>
chip_gen: v6e
topology: v6e:2x2x1
jax: 0.10.0
libtpu: 0.0.40
codegen_flags: <defaults>
</compile_context>

<pallas_src>
import functools

import jax
import jax.numpy as jnp
from jax.experimental import pallas as pl
from jax.experimental.pallas import tpu as pltpu


# ----------------------- Pallas kernel: one LSTM layer ----------------------- #
# grid = (num_dirs,)  — each grid step handles one direction end-to-end.
# Per-direction blocks (leading direction dim squeezed via None in block_shape):
#   gx_ref : (T, B, 4H) f32   precomputed x @ W_ih^T + (b_ih + b_hh)
#   whh_ref: (H, 4H)    bf16  recurrent weights, transposed
#   h0_ref, c0_ref: (B, H) f32
#   y_ref  : (T, B, H)  f32   per-direction output sequence
#   hn_ref, cn_ref: (B, H) f32 final states

def _lstm_dir_kernel(gx_ref, whh_ref, h0_ref, c0_ref, y_ref, hn_ref, cn_ref):
    d = pl.program_id(0)
    T = gx_ref.shape[0]
    H = h0_ref.shape[-1]

    # d == 1 is the backward direction (never true when num_dirs == 1).
    reverse = d == 1

    whh = whh_ref[...]                       # (H, 4H) bf16, loop-invariant
    h = h0_ref[...].astype(jnp.float32)      # (B, H)
    c = c0_ref[...].astype(jnp.float32)      # (B, H)

    def step(t, carry):
        h, c = carry
        # Backward direction walks the sequence in reverse; output lands at the
        # original (non-reversed) time index, matching PyTorch semantics.
        t_idx = jnp.where(reverse, T - 1 - t, t)

        # gates: (B, 4H) = precomputed input projection + h_{t-1} @ W_hh^T
        gates = gx_ref[t_idx] + jnp.dot(
            h.astype(jnp.bfloat16), whh, preferred_element_type=jnp.float32)

        # PyTorch gate order: input, forget, cell(g), output
        i = jax.nn.sigmoid(gates[:, 0 * H:1 * H])
        f = jax.nn.sigmoid(gates[:, 1 * H:2 * H])
        g = jnp.tanh(gates[:, 2 * H:3 * H])
        o = jax.nn.sigmoid(gates[:, 3 * H:4 * H])

        c_new = f * c + i * g
        h_new = o * jnp.tanh(c_new)

        y_ref[t_idx] = h_new.astype(y_ref.dtype)
        return h_new, c_new

    h_last, c_last = jax.lax.fori_loop(0, T, step, (h, c))
    hn_ref[...] = h_last.astype(hn_ref.dtype)
    cn_ref[...] = c_last.astype(cn_ref.dtype)


def lstm_layer_bidir_pallas(x_seq, w_ih_stack, w_hh_stack, bias_stack, h0, c0):
    """Run one LSTM layer (all directions fused) over the whole sequence.

    x_seq     : (T, B, D) f32
    w_ih_stack: (num_dirs, 4H, D)
    w_hh_stack: (num_dirs, 4H, H)
    bias_stack: (num_dirs, 4H)          (b_ih + b_hh)
    h0, c0    : (num_dirs, B, H)
    Returns y (T, B, num_dirs*H), h_n (num_dirs, B, H), c_n (num_dirs, B, H).
    """
    T, B, D = x_seq.shape
    num_dirs, four_h, _ = w_ih_stack.shape
    H = four_h // 4

    # ---- Hoisted input projection: one bf16 matmul for all timesteps & dirs ----
    wih_t = jnp.transpose(w_ih_stack, (0, 2, 1)).astype(jnp.bfloat16)   # (nd, D, 4H)
    whh_t = jnp.transpose(w_hh_stack, (0, 2, 1)).astype(jnp.bfloat16)   # (nd, H, 4H)
    gx = jnp.einsum('tbd,ndg->ntbg', x_seq.astype(jnp.bfloat16), wih_t,
                    preferred_element_type=jnp.float32)                 # (nd, T, B, 4H)
    gx = gx + bias_stack.astype(jnp.float32)[:, None, None, :]

    y, hn, cn = pl.pallas_call(
        _lstm_dir_kernel,
        out_shape=(jax.ShapeDtypeStruct((num_dirs, T, B, H), jnp.float32),
                   jax.ShapeDtypeStruct((num_dirs, B, H), jnp.float32),
                   jax.ShapeDtypeStruct((num_dirs, B, H), jnp.float32)),
        grid_spec=pltpu.PrefetchScalarGridSpec(
            num_scalar_prefetch=0,
            grid=(num_dirs,),
            in_specs=[
                pl.BlockSpec((None, T, B, 4 * H), lambda d: (d, 0, 0, 0)),  # gx
                pl.BlockSpec((None, H, 4 * H), lambda d: (d, 0, 0)),        # W_hh^T
                pl.BlockSpec((None, B, H), lambda d: (d, 0, 0)),            # h0
                pl.BlockSpec((None, B, H), lambda d: (d, 0, 0)),            # c0
            ],
            out_specs=[
                pl.BlockSpec((None, T, B, H), lambda d: (d, 0, 0, 0)),      # y
                pl.BlockSpec((None, B, H), lambda d: (d, 0, 0)),            # h_n
                pl.BlockSpec((None, B, H), lambda d: (d, 0, 0)),            # c_n
            ],
        ),
        # Directions are independent -> parallel grid axis (both TCs on v7x).
        compiler_params=pltpu.CompilerParams(
            dimension_semantics=("parallel",)),
    )(gx, whh_t, h0.astype(jnp.float32), c0.astype(jnp.float32))

    # (nd, T, B, H) -> (T, B, nd*H): forward features first, then backward.
    y_out = jnp.concatenate([y[dd] for dd in range(num_dirs)], axis=-1)
    return y_out, hn, cn


# ------------------------------ encoder module ------------------------------- #

def init_encoder_params(key, vocab_size, embedding_dim, hidden_dim,
                        n_layers, bidirectional):
    """Deterministic parameter init (stand-in for Glove embeddings + LSTM init)."""
    num_dirs = 2 if bidirectional else 1
    stdv = 1.0 / jnp.sqrt(jnp.float32(hidden_dim))
    keys = jax.random.split(key, 1 + 4 * n_layers * num_dirs)
    params = {
        "embedding": jax.random.normal(
            keys[0], (vocab_size, embedding_dim), dtype=jnp.float32) * 0.1,
        "lstm": {},
    }
    k_idx = 1
    for l in range(n_layers):
        in_dim = embedding_dim if l == 0 else num_dirs * hidden_dim
        w_ih_l, w_hh_l, b_l = [], [], []
        for _ in range(num_dirs):
            w_ih = jax.random.uniform(keys[k_idx], (4 * hidden_dim, in_dim),
                                      minval=-stdv, maxval=stdv); k_idx += 1
            w_hh = jax.random.uniform(keys[k_idx], (4 * hidden_dim, hidden_dim),
                                      minval=-stdv, maxval=stdv); k_idx += 1
            b_ih = jax.random.uniform(keys[k_idx], (4 * hidden_dim,),
                                      minval=-stdv, maxval=stdv); k_idx += 1
            b_hh = jax.random.uniform(keys[k_idx], (4 * hidden_dim,),
                                      minval=-stdv, maxval=stdv); k_idx += 1
            w_ih_l.append(w_ih); w_hh_l.append(w_hh); b_l.append(b_ih + b_hh)
        params["lstm"][l] = (jnp.stack(w_ih_l, 0),      # (nd, 4H, in_dim)
                             jnp.stack(w_hh_l, 0),      # (nd, 4H, H)
                             jnp.stack(b_l, 0))         # (nd, 4H)
    return params


def encoder_forward(params, x_tokens, hidden, n_layers, bidirectional):
    """Mirrors encoder.forward(x, hidden).

    x_tokens: (T, B) int32.
    hidden: (h0, c0), each (n_layers*num_dirs, B, H).
    Returns (output, (h_n, c_n)) with
      output: (T, B, num_dirs*H), h_n/c_n: (n_layers*num_dirs, B, H).
    """
    num_dirs = 2 if bidirectional else 1
    h0_all, c0_all = hidden

    # Embedding lookup (gather) — glue in plain JAX/XLA.
    emb = jnp.take(params["embedding"], x_tokens, axis=0)   # (T, B, E)

    layer_in = emb
    hn_list, cn_list = [], []
    for l in range(n_layers):
        w_ih_s, w_hh_s, bias_s = params["lstm"][l]
        h0_l = h0_all[l * num_dirs:(l + 1) * num_dirs]
        c0_l = c0_all[l * num_dirs:(l + 1) * num_dirs]
        layer_in, hn_l, cn_l = lstm_layer_bidir_pallas(
            layer_in, w_ih_s, w_hh_s, bias_s, h0_l, c0_l)
        hn_list.append(hn_l)
        cn_list.append(cn_l)

    output = layer_in
    h_n = jnp.concatenate(hn_list, axis=0)
    c_n = jnp.concatenate(cn_list, axis=0)
    return output, (h_n, c_n)


# ----------------------------------- main ------------------------------------ #

if __name__ == "__main__":
    VOCAB_SIZE = 64
    EMBEDDING_DIM = 32
    HIDDEN_DIM = 32
    ENC_N_LAYERS = 2
    BIDIRECTIONAL = True
    SEQ_LEN = 8
    BATCH = 2

    num_dirs = 2 if BIDIRECTIONAL else 1
    init_hid = num_dirs * ENC_N_LAYERS

    root = jax.random.PRNGKey(0)
    k_params, k_tokens, k_h, k_c = jax.random.split(root, 4)

    params = init_encoder_params(k_params, VOCAB_SIZE, EMBEDDING_DIM,
                                 HIDDEN_DIM, ENC_N_LAYERS, BIDIRECTIONAL)

    # x: (T, B) token ids (seq-first, as implied by x.shape[1] == batch in forward()).
    x = jax.random.randint(k_tokens, (SEQ_LEN, BATCH), 0, VOCAB_SIZE, dtype=jnp.int32)

    # initHidden: torch.randn(init_hid, B, H) — deterministic normal draws here.
    h0 = jax.random.normal(k_h, (init_hid, BATCH, HIDDEN_DIM), dtype=jnp.float32)
    c0 = jax.random.normal(k_c, (init_hid, BATCH, HIDDEN_DIM), dtype=jnp.float32)

    fwd = jax.jit(functools.partial(encoder_forward, n_layers=ENC_N_LAYERS,
                                    bidirectional=BIDIRECTIONAL))
    output, (h_n, c_n) = fwd(params, x, (h0, c0))

    jax.block_until_ready((output, h_n, c_n))

    assert output.shape == (SEQ_LEN, BATCH, num_dirs * HIDDEN_DIM)
    assert h_n.shape == (init_hid, BATCH, HIDDEN_DIM)
    assert c_n.shape == (init_hid, BATCH, HIDDEN_DIM)
    assert bool(jnp.all(jnp.isfinite(output)))

    print("KERNEL_OK")
</pallas_src>

<mosaic_0001>
module attributes {stable_mosaic.version = 11 : i64} {
  func.func @_lstm_dir_kernel(%arg0: i32, %arg1: memref<1x8x2x128xf32, #tpu.memory_space<vmem>>, %arg2: memref<1x32x128xbf16, #tpu.memory_space<vmem>>, %arg3: memref<1x2x32xf32, #tpu.memory_space<vmem>>, %arg4: memref<1x2x32xf32, #tpu.memory_space<vmem>>, %arg5: memref<1x8x2x32xf32, #tpu.memory_space<vmem>>, %arg6: memref<1x2x32xf32, #tpu.memory_space<vmem>>, %arg7: memref<1x2x32xf32, #tpu.memory_space<vmem>>) attributes {dimension_semantics = [#tpu.dimension_semantics<parallel>], iteration_bounds = array<i64: 2>, scalar_prefetch = 0 : i64, scratch_operands = 0 : i64, tpu.core_type = #tpu.core_type<tc>, window_params = [{transform_indices = @transform_0, window_bounds = array<i64: 1, 8, 2, 128>}, {transform_indices = @transform_1, window_bounds = array<i64: 1, 32, 128>}, {transform_indices = @transform_2, window_bounds = array<i64: 1, 2, 32>}, {transform_indices = @transform_3, window_bounds = array<i64: 1, 2, 32>}, {transform_indices = @transform_4, window_bounds = array<i64: 1, 8, 2, 32>}, {transform_indices = @transform_5, window_bounds = array<i64: 1, 2, 32>}, {transform_indices = @transform_6, window_bounds = array<i64: 1, 2, 32>}]} {
    %c1_i32 = arith.constant 1 : i32
    %0 = arith.cmpi eq, %arg0, %c1_i32 : i32
    %c0 = arith.constant 0 : index
    %c0_0 = arith.constant 0 : index
    %c0_1 = arith.constant 0 : index
    %1 = vector.load %arg2[%c0, %c0_0, %c0_1] : memref<1x32x128xbf16, #tpu.memory_space<vmem>>, vector<1x32x128xbf16>
    %2 = vector.shape_cast %1 : vector<1x32x128xbf16> to vector<32x128xbf16>
    %c0_2 = arith.constant 0 : index
    %c0_3 = arith.constant 0 : index
    %c0_4 = arith.constant 0 : index
    %3 = vector.load %arg3[%c0_2, %c0_3, %c0_4] : memref<1x2x32xf32, #tpu.memory_space<vmem>>, vector<1x2x32xf32>
    %4 = vector.shape_cast %3 : vector<1x2x32xf32> to vector<2x32xf32>
    %c0_5 = arith.constant 0 : index
    %c0_6 = arith.constant 0 : index
    %c0_7 = arith.constant 0 : index
    %5 = vector.load %arg4[%c0_5, %c0_6, %c0_7] : memref<1x2x32xf32, #tpu.memory_space<vmem>>, vector<1x2x32xf32>
    %6 = vector.shape_cast %5 : vector<1x2x32xf32> to vector<2x32xf32>
    %c0_i32 = arith.constant 0 : i32
    %c8_i32 = arith.constant 8 : i32
    %7 = arith.addi %c0_i32, %c8_i32 : i32
    %c1_i32_8 = arith.constant 1 : i32
    %8:2 = scf.for %arg8 = %c0_i32 to %7 step %c1_i32_8 iter_args(%arg9 = %4, %arg10 = %6) -> (vector<2x32xf32>, vector<2x32xf32>)  : i32 {
      %c7_i32 = arith.constant 7 : i32
      %15 = arith.subi %c7_i32, %arg8 : i32
      %16 = arith.select %0, %15, %arg8 : i32
      %c0_16 = arith.constant 0 : index
      %17 = arith.index_cast %16 : i32 to index
      %c0_17 = arith.constant 0 : index
      %c0_18 = arith.constant 0 : index
      %18 = vector.load %arg1[%c0_16, %17, %c0_17, %c0_18] : memref<1x8x2x128xf32, #tpu.memory_space<vmem>>, vector<1x1x2x128xf32>
      %19 = vector.shape_cast %18 : vector<1x1x2x128xf32> to vector<2x128xf32>
      %20 = arith.truncf %arg9 : vector<2x32xf32> to vector<2x32xbf16>
      %cst = arith.constant dense<0.000000e+00> : vector<2x128xf32>
      %21 = tpu.matmul %20, %2, %cst {dimension_numbers = #tpu.dot_dimension_numbers<[1], [0], [0], [1], [0, 0, 1, 1], [], []>} : vector<2x32xbf16>, vector<32x128xbf16>, vector<2x128xf32> -> vector<2x128xf32>
      %22 = arith.addf %19, %21 : vector<2x128xf32>
      %23 = vector.extract_strided_slice %22 {offsets = [0, 0], sizes = [2, 32], strides = [1, 1]} : vector<2x128xf32> to vector<2x32xf32>
      %24 = arith.negf %23 : vector<2x32xf32>
      %25 = math.exp %24 : vector<2x32xf32>
      %cst_19 = arith.constant 1.000000e+00 : f32
      %26 = vector.broadcast %cst_19 : f32 to vector<2x32xf32>
      %27 = arith.addf %26, %25 : vector<2x32xf32>
      %28 = arith.divf %26, %27 : vector<2x32xf32>
      %29 = vector.extract_strided_slice %22 {offsets = [0, 32], sizes = [2, 32], strides = [1, 1]} : vector<2x128xf32> to vector<2x32xf32>
      %30 = arith.negf %29 : vector<2x32xf32>
      %31 = math.exp %30 : vector<2x32xf32>
      %cst_20 = arith.constant 1.000000e+00 : f32
      %32 = vector.broadcast %cst_20 : f32 to vector<2x32xf32>
      %33 = arith.addf %32, %31 : vector<2x32xf32>
      %34 = arith.divf %32, %33 : vector<2x32xf32>
      %35 = vector.extract_strided_slice %22 {offsets = [0, 64], sizes = [2, 32], strides = [1, 1]} : vector<2x128xf32> to vector<2x32xf32>
      %36 = math.tanh %35 : vector<2x32xf32>
      %37 = vector.extract_strided_slice %22 {offsets = [0, 96], sizes = [2, 32], strides = [1, 1]} : vector<2x128xf32> to vector<2x32xf32>
      %38 = arith.negf %37 : vector<2x32xf32>
      %39 = math.exp %38 : vector<2x32xf32>
      %cst_21 = arith.constant 1.000000e+00 : f32
      %40 = vector.broadcast %cst_21 : f32 to vector<2x32xf32>
      %41 = arith.addf %40, %39 : vector<2x32xf32>
      %42 = arith.divf %40, %41 : vector<2x32xf32>
      %43 = arith.mulf %34, %arg10 : vector<2x32xf32>
      %44 = arith.mulf %28, %36 : vector<2x32xf32>
      %45 = arith.addf %43, %44 : vector<2x32xf32>
      %46 = math.tanh %45 : vector<2x32xf32>
      %47 = arith.mulf %42, %46 : vector<2x32xf32>
      %c0_22 = arith.constant 0 : index
      %48 = arith.index_cast %16 : i32 to index
      %c0_23 = arith.constant 0 : index
      %c0_24 = arith.constant 0 : index
      %49 = vector.load %arg5[%c0_22, %48, %c0_23, %c0_24] : memref<1x8x2x32xf32, #tpu.memory_space<vmem>>, vector<1x1x2x32xf32>
      %50 = vector.shape_cast %49 : vector<1x1x2x32xf32> to vector<2x32xf32>
      %51 = vector.shape_cast %47 : vector<2x32xf32> to vector<1x1x2x32xf32>
      tpu.vector_store %arg5[%c0_22, %48, %c0_23, %c0_24], %51 {strides = array<i32>} : memref<1x8x2x32xf32, #tpu.memory_space<vmem>>, vector<1x1x2x32xf32>,
      scf.yield %47, %45 : vector<2x32xf32>, vector<2x32xf32>
    }
    %c8_i32_9 = arith.constant 8 : i32
    %c0_10 = arith.constant 0 : index
    %c0_11 = arith.constant 0 : index
    %c0_12 = arith.constant 0 : index
    %9 = vector.load %arg6[%c0_10, %c0_11, %c0_12] : memref<1x2x32xf32, #tpu.memory_space<vmem>>, vector<1x2x32xf32>
    %10 = vector.shape_cast %9 : vector<1x2x32xf32> to vector<2x32xf32>
    %11 = vector.shape_cast %8#0 : vector<2x32xf32> to vector<1x2x32xf32>
    tpu.vector_store %arg6[%c0_10, %c0_11, %c0_12], %11 {strides = array<i32>} : memref<1x2x32xf32, #tpu.memory_space<vmem>>, vector<1x2x32xf32>,
    %c0_13 = arith.constant 0 : index
    %c0_14 = arith.constant 0 : index
    %c0_15 = arith.constant 0 : index
    %12 = vector.load %arg7[%c0_13, %c0_14, %c0_15] : memref<1x2x32xf32, #tpu.memory_space<vmem>>, vector<1x2x32xf32>
    %13 = vector.shape_cast %12 : vector<1x2x32xf32> to vector<2x32xf32>
    %14 = vector.shape_cast %8#1 : vector<2x32xf32> to vector<1x2x32xf32>
    tpu.vector_store %arg7[%c0_13, %c0_14, %c0_15], %14 {strides = array<i32>} : memref<1x2x32xf32, #tpu.memory_space<vmem>>, vector<1x2x32xf32>,
    return
  }
  func.func @transform_0(%arg0: i32) -> (i32, i32, i32, i32) {
    %c0_i32 = arith.constant 0 : i32
    %c0_i32_0 = arith.constant 0 : i32
    %c0_i32_1 = arith.constant 0 : i32
    %c0_i32_2 = arith.constant 0 : i32
    return %arg0, %c0_i32, %c0_i32_0, %c0_i32_1 : i32, i32, i32, i32
  }
  func.func @transform_1(%arg0: i32) -> (i32, i32, i32) {
    %c0_i32 = arith.constant 0 : i32
    %c0_i32_0 = arith.constant 0 : i32
    %c0_i32_1 = arith.constant 0 : i32
    return %arg0, %c0_i32, %c0_i32_0 : i32, i32, i32
  }
  func.func @transform_2(%arg0: i32) -> (i32, i32, i32) {
    %c0_i32 = arith.constant 0 : i32
    %c0_i32_0 = arith.constant 0 : i32
    %c0_i32_1 = arith.constant 0 : i32
    return %arg0, %c0_i32, %c0_i32_0 : i32, i32, i32
  }
  func.func @transform_3(%arg0: i32) -> (i32, i32, i32) {
    %c0_i32 = arith.constant 0 : i32
    %c0_i32_0 = arith.constant 0 : i32
    %c0_i32_1 = arith.constant 0 : i32
    return %arg0, %c0_i32, %c0_i32_0 : i32, i32, i32
  }
  func.func @transform_4(%arg0: i32) -> (i32, i32, i32, i32) {
    %c0_i32 = arith.constant 0 : i32
    %c0_i32_0 = arith.constant 0 : i32
    %c0_i32_1 = arith.constant 0 : i32
    %c0_i32_2 = arith.constant 0 : i32
    return %arg0, %c0_i32, %c0_i32_0, %c0_i32_1 : i32, i32, i32, i32
  }
  func.func @transform_5(%arg0: i32) -> (i32, i32, i32) {
    %c0_i32 = arith.constant 0 : i32
    %c0_i32_0 = arith.constant 0 : i32
    %c0_i32_1 = arith.constant 0 : i32
    return %arg0, %c0_i32, %c0_i32_0 : i32, i32, i32
  }
  func.func @transform_6(%arg0: i32) -> (i32, i32, i32) {
    %c0_i32 = arith.constant 0 : i32
    %c0_i32_0 = arith.constant 0 : i32
    %c0_i32_1 = arith.constant 0 : i32
    return %arg0, %c0_i32, %c0_i32_0 : i32, i32, i32
  }
}

</mosaic_0001>

<llo_original>
// kernel: encoder_forward.2
$region0: #{encoder_forward.2}
  #allocation0 [shape = 'u32[]', space=smem, size = 0x4, offset = 0x4, fixed_abs, tag = 'smem constant byte address 0x4 - core index']
  #allocation1 [shape = 'u32[144,128]{1,0:T(1,128)}', space=vmem, size = 0x12000, scoped, tag = 'internal scratch']
  %s0 = inlined_call_operand.vmem [shape: f32[2,8,2,128], index: 0, kind: input, shape index: {}]
  %s1 = inlined_call_operand.vmem [shape: bf16[2,32,128], index: 1, kind: input, shape index: {}]
  %s2 = inlined_call_operand.vmem [shape: f32[2,2,32], index: 2, kind: input, shape index: {}]
  %s3 = inlined_call_operand.vmem [shape: f32[2,2,32], index: 3, kind: input, shape index: {}]
  %s4 = inlined_call_operand.vmem [shape: f32[2,8,2,32], index: 4, kind: output, shape index: {0}]
  %s5 = inlined_call_operand.vmem [shape: f32[2,2,32], index: 5, kind: output, shape index: {1}]
  %s6 = inlined_call_operand.vmem [shape: f32[2,2,32], index: 6, kind: output, shape index: {2}]
  %7 = xla_tuple %s4, %s5, %s6
  %s8 = sld [smem:[#allocation0]]
  $region72: #{encoder_forward.2} parent=0
    _
  %s10 = ssub.s32 1, %s8
  %s11 = scalar_select 0, %s10, %s8
  loop: start=0, step=1, limit=4
  $region2: #{encoder_forward.2} parent=0 // loop_pre_header
    _
  $region3: #{encoder_forward.2} parent=0 // loop_header
    %s13 = sphi 0, %s17
    %p14 = scmp.ge.s32.totalorder %s13, 4
    %s23 = sphi 0, %s25
    %s26 = sphi 0, %s23
    %s27 = sphi 0, %s26
    %s43 = sphi 0, %s27
    %s49 = sphi 0, %s51
    %s52 = sphi 0, %s49
    %s53 = sphi 0, %s52
    %s69 = sphi 0, %s53
    %s75 = sphi 0, %s77
    %s78 = sphi 0, %s75
    %s79 = sphi 0, %s78
    %s95 = sphi 0, %s79
    %s101 = sphi 0, %s103
    %s104 = sphi 0, %s101
    %s105 = sphi 0, %s104
    %s121 = sphi 0, %s105
    %s127 = sphi 0, %s129
    %s130 = sphi 0, %s127
    %s131 = sphi 0, %s130
    %s147 = sphi 0, %s131
    %s153 = sphi 0, %s155
    %s156 = sphi 0, %s153
    %s157 = sphi 0, %s156
    %s173 = sphi 0, %s157
    %s179 = sphi 0, %s181
    %s182 = sphi 0, %s179
    %s183 = sphi 0, %s182
    %s199 = sphi 0, %s183
  $region4: #{encoder_forward.2} parent=0 // loop_header_branch
    %16 = sbr.rel (%p14) target = $region8
  $region5: #{encoder_forward.2} parent=0 // loop_body
    %s18 = ssub.s32 %s13, 1
    %s19 = ssub.s32 %s13, 2
    %s20 = sadd.s32 %s13, 1
    %s21 = ssub.s32 %s13, %s20
    %p22 = scmp.eq.s32.totalorder %s21, 0
    %s24 = sadd.s32 %s23, 1
    %s25 = scalar_select %p22, %s23, %s24
    %p28 = pneg %p22
    %p29 = scmp.eq.s32.totalorder %s13, 1
    %p30 = por %p28, %p29
    %p31 = scmp.ne.s32.totalorder %s23, %s26
    %p32 = scmp.eq.s32.totalorder %s13, 0
    %p33 = por %p31, %p32
    %p34 = scmp.ne.s32.totalorder %s23, %s26
    %p35 = scmp.eq.s32.totalorder %s18, 1
    %p36 = por %p34, %p35
    %p37 = scmp.ne.s32.totalorder %s26, %s27
    %p38 = scmp.eq.s32.totalorder %s18, 0
    %p39 = por %p37, %p38
    %p40 = scmp.ne.s32.totalorder %s26, %s27
    %p41 = scmp.eq.s32.totalorder %s19, 1
    %p42 = por %p40, %p41
    %p44 = scmp.ne.s32.totalorder %s27, %s43
    %p45 = scmp.eq.s32.totalorder %s19, 0
    %p46 = por %p44, %p45
    %s47 = ssub.s32 %s13, %s20
    %p48 = scmp.eq.s32.totalorder %s47, 0
    %s50 = sadd.s32 %s49, 1
    %s51 = scalar_select %p48, %s49, %s50
    %p54 = pneg %p48
    %p55 = scmp.eq.s32.totalorder %s13, 1
    %p56 = por %p54, %p55
    %p57 = scmp.ne.s32.totalorder %s49, %s52
    %p58 = scmp.eq.s32.totalorder %s13, 0
    %p59 = por %p57, %p58
    %p60 = scmp.ne.s32.totalorder %s49, %s52
    %p61 = scmp.eq.s32.totalorder %s18, 1
    %p62 = por %p60, %p61
    %p63 = scmp.ne.s32.totalorder %s52, %s53
    %p64 = scmp.eq.s32.totalorder %s18, 0
    %p65 = por %p63, %p64
    %p66 = scmp.ne.s32.totalorder %s52, %s53
    %p67 = scmp.eq.s32.totalorder %s19, 1
    %p68 = por %p66, %p67
    %p70 = scmp.ne.s32.totalorder %s53, %s69
    %p71 = scmp.eq.s32.totalorder %s19, 0
    %p72 = por %p70, %p71
    %s73 = ssub.s32 %s13, %s20
    %p74 = scmp.eq.s32.totalorder %s73, 0
    %s76 = sadd.s32 %s75, 1
    %s77 = scalar_select %p74, %s75, %s76
    %p80 = pneg %p74
    %p81 = scmp.eq.s32.totalorder %s13, 1
    %p82 = por %p80, %p81
    %p83 = scmp.ne.s32.totalorder %s75, %s78
    %p84 = scmp.eq.s32.totalorder %s13, 0
    %p85 = por %p83, %p84
    %p86 = scmp.ne.s32.totalorder %s75, %s78
    %p87 = scmp.eq.s32.totalorder %s18, 1
    %p88 = por %p86, %p87
    %p89 = scmp.ne.s32.totalorder %s78, %s79
    %p90 = scmp.eq.s32.totalorder %s18, 0
    %p91 = por %p89, %p90
    %p92 = scmp.ne.s32.totalorder %s78, %s79
    %p93 = scmp.eq.s32.totalorder %s19, 1
    %p94 = por %p92, %p93
    %p96 = scmp.ne.s32.totalorder %s79, %s95
    %p97 = scmp.eq.s32.totalorder %s19, 0
    %p98 = por %p96, %p97
    %s99 = ssub.s32 %s13, %s20
    %p100 = scmp.eq.s32.totalorder %s99, 0
    %s102 = sadd.s32 %s101, 1
    %s103 = scalar_select %p100, %s101, %s102
    %p106 = pneg %p100
    %p107 = scmp.eq.s32.totalorder %s13, 1
    %p108 = por %p106, %p107
    %p109 = scmp.ne.s32.totalorder %s101, %s104
    %p110 = scmp.eq.s32.totalorder %s13, 0
    %p111 = por %p109, %p110
    %p112 = scmp.ne.s32.totalorder %s101, %s104
    %p113 = scmp.eq.s32.totalorder %s18, 1
    %p114 = por %p112, %p113
    %p115 = scmp.ne.s32.totalorder %s104, %s105
    %p116 = scmp.eq.s32.totalorder %s18, 0
    %p117 = por %p115, %p116
    %p118 = scmp.ne.s32.totalorder %s104, %s105
    %p119 = scmp.eq.s32.totalorder %s19, 1
    %p120 = por %p118, %p119
    %p122 = scmp.ne.s32.totalorder %s105, %s121
    %p123 = scmp.eq.s32.totalorder %s19, 0
    %p124 = por %p122, %p123
    %s125 = ssub.s32 %s13, %s20
    %p126 = scmp.eq.s32.totalorder %s125, 0
    %s128 = sadd.s32 %s127, 1
    %s129 = scalar_select %p126, %s127, %s128
    %p132 = pneg %p126
    %p133 = scmp.eq.s32.totalorder %s13, 1
    %p134 = por %p132, %p133
    %p135 = scmp.ne.s32.totalorder %s127, %s130
    %p136 = scmp.eq.s32.totalorder %s13, 0
    %p137 = por %p135, %p136
    %p138 = scmp.ne.s32.totalorder %s127, %s130
    %p139 = scmp.eq.s32.totalorder %s18, 1
    %p140 = por %p138, %p139
    %p141 = scmp.ne.s32.totalorder %s130, %s131
    %p142 = scmp.eq.s32.totalorder %s18, 0
    %p143 = por %p141, %p142
    %p144 = scmp.ne.s32.totalorder %s130, %s131
    %p145 = scmp.eq.s32.totalorder %s19, 1
    %p146 = por %p144, %p145
    %p148 = scmp.ne.s32.totalorder %s131, %s147
    %p149 = scmp.eq.s32.totalorder %s19, 0
    %p150 = por %p148, %p149
    %s151 = ssub.s32 %s13, %s20
    %p152 = scmp.eq.s32.totalorder %s151, 0
    %s154 = sadd.s32 %s153, 1
    %s155 = scalar_select %p152, %s153, %s154
    %p158 = pneg %p152
    %p159 = scmp.eq.s32.totalorder %s13, 1
    %p160 = por %p158, %p159
    %p161 = scmp.ne.s32.totalorder %s153, %s156
    %p162 = scmp.eq.s32.totalorder %s13, 0
    %p163 = por %p161, %p162
    %p164 = scmp.ne.s32.totalorder %s153, %s156
    %p165 = scmp.eq.s32.totalorder %s18, 1
    %p166 = por %p164, %p165
    %p167 = scmp.ne.s32.totalorder %s156, %s157
    %p168 = scmp.eq.s32.totalorder %s18, 0
    %p169 = por %p167, %p168
    %p170 = scmp.ne.s32.totalorder %s156, %s157
    %p171 = scmp.eq.s32.totalorder %s19, 1
    %p172 = por %p170, %p171
    %p174 = scmp.ne.s32.totalorder %s157, %s173
    %p175 = scmp.eq.s32.totalorder %s19, 0
    %p176 = por %p174, %p175
    %s177 = ssub.s32 %s13, %s20
    %p178 = scmp.eq.s32.totalorder %s177, 0
    %s180 = sadd.s32 %s179, 1
    %s181 = scalar_select %p178, %s179, %s180
    %p184 = pneg %p178
    %p185 = scmp.eq.s32.totalorder %s13, 1
    %p186 = por %p184, %p185
    %p187 = scmp.ne.s32.totalorder %s179, %s182
    %p188 = scmp.eq.s32.totalorder %s13, 0
    %p189 = por %p187, %p188
    %p190 = scmp.ne.s32.totalorder %s179, %s182
    %p191 = scmp.eq.s32.totalorder %s18, 1
    %p192 = por %p190, %p191
    %p193 = scmp.ne.s32.totalorder %s182, %s183
    %p194 = scmp.eq.s32.totalorder %s18, 0
    %p195 = por %p193, %p194
    %p196 = scmp.ne.s32.totalorder %s182, %s183
    %p197 = scmp.eq.s32.totalorder %s19, 1
    %p198 = por %p196, %p197
    %p200 = scmp.ne.s32.totalorder %s183, %s199
    %p201 = scmp.eq.s32.totalorder %s19, 0
    %p202 = por %p200, %p201
    %p203 = scmp.le.s32.totalorder 1, %s13
    %p204 = scmp.lt.s32.totalorder %s13, 3
    %p205 = pnand %p203, %p204
    %p206 = pneg %p205
    // Predicated region
    $region9: #{encoder_forward.2} parent=5 // pred_check
      _
    $region10: #{encoder_forward.2} parent=5 // pred_check_branch
      %208 = sbr.rel (%p205) target = $region12
    $region11: #{encoder_forward.2} parent=5 // pred_region
      %s209 = ssub.s32 %s13, 1
    $region12: #{encoder_forward.2} parent=5 // pred_fallthru
      _
    %p210 = scmp.lt.s32.totalorder %s13, 2
    // Predicated region
    $region13: #{encoder_forward.2} parent=5 // pred_check
      %p211 = pneg %p210
    $region14: #{encoder_forward.2} parent=5 // pred_check_branch
      %213 = sbr.rel (%p211) target = $region16
    $region15: #{encoder_forward.2} parent=5 // pred_region
      // Predicated region
      $region17: #{encoder_forward.2} parent=15 // pred_check
        %p214 = pneg %p33
      $region18: #{encoder_forward.2} parent=15 // pred_check_branch
        %216 = sbr.rel (%p214) target = $region20
      $region19: #{encoder_forward.2} parent=15 // pred_region
        %p217 = scmp.lt.s32.totalorder %s13, 1
        %s218 = scalar_select %p217, %s13, 1
        %s219 = smul.addr %s218, 8
        %s220 = smul.addr %s219, 2
        %s221 = scalar_lea.vmem %s0, %s220
      $region20: #{encoder_forward.2} parent=15 // pred_fallthru
        _
      // Predicated region
      $region21: #{encoder_forward.2} parent=15 // pred_check
        %p222 = pneg %p59
      $region22: #{encoder_forward.2} parent=15 // pred_check_branch
        %224 = sbr.rel (%p222) target = $region24
      $region23: #{encoder_forward.2} parent=15 // pred_region
        %p225 = scmp.lt.s32.totalorder %s13, 1
        %s226 = scalar_select %p225, %s13, 1
        %s227 = smul.addr %s226, 4
        %s228 = smul.addr %s227, 4
        %s229 = scalar_lea.vmem %s1, %s228
      $region24: #{encoder_forward.2} parent=15 // pred_fallthru
        _
      // Predicated region
      $region25: #{encoder_forward.2} parent=15 // pred_check
        %p230 = pneg %p85
      $region26: #{encoder_forward.2} parent=15 // pred_check_branch
        %232 = sbr.rel (%p230) target = $region28
      $region27: #{encoder_forward.2} parent=15 // pred_region
        %p233 = scmp.lt.s32.totalorder %s13, 1
        %s234 = scalar_select %p233, %s13, 1
        %s235 = smul.addr %s234, 2
        %s236 = scalar_lea.vmem %s2, %s235
      $region28: #{encoder_forward.2} parent=15 // pred_fallthru
        _
      // Predicated region
      $region29: #{encoder_forward.2} parent=15 // pred_check
        %p237 = pneg %p111
      $region30: #{encoder_forward.2} parent=15 // pred_check_branch
        %239 = sbr.rel (%p237) target = $region32
      $region31: #{encoder_forward.2} parent=15 // pred_region
        %p240 = scmp.lt.s32.totalorder %s13, 1
        %s241 = scalar_select %p240, %s13, 1
        %s242 = smul.addr %s241, 2
        %s243 = scalar_lea.vmem %s3, %s242
      $region32: #{encoder_forward.2} parent=15 // pred_fallthru
        _
    $region16: #{encoder_forward.2} parent=5 // pred_fallthru
      _
    %p244 = scmp.le.s32.totalorder 1, %s13
    %p245 = scmp.lt.s32.totalorder %s13, 3
    %p246 = pnand %p244, %p245
    %p247 = pneg %p246
    // Predicated region
    $region33: #{encoder_forward.2} parent=5 // pred_check
      _
    $region34: #{encoder_forward.2} parent=5 // pred_check_branch
      %249 = sbr.rel (%p246) target = $region36
    $region35: #{encoder_forward.2} parent=5 // pred_region
      %s250 = ssub.s32 %s13, 1
      %p251 = scmp.lt.s32.totalorder %s18, 1
      %s252 = scalar_select %p251, %s18, 1
      %s253 = smul.addr %s252, 8
      %s254 = smul.addr %s253, 2
      %s255 = scalar_lea.vmem %s0, %s254
      %p256 = pneg %p39
      %p257 = pneg %p36
      %p258 = scmp.lt.s32.totalorder %s18, 1
      %s259 = scalar_select %p258, %s18, 1
      %s260 = smul.addr %s259, 4
      %s261 = smul.addr %s260, 4
      %s262 = scalar_lea.vmem %s1, %s261
      %p263 = pneg %p65
      %p264 = pneg %p62
      %p265 = scmp.lt.s32.totalorder %s18, 1
      %s266 = scalar_select %p265, %s18, 1
      %s267 = smul.addr %s266, 2
      %s268 = scalar_lea.vmem %s2, %s267
      %p269 = pneg %p91
      %p270 = pneg %p88
      %p271 = scmp.lt.s32.totalorder %s18, 1
      %s272 = scalar_select %p271, %s18, 1
      %s273 = smul.addr %s272, 2
      %s274 = scalar_lea.vmem %s3, %s273
      %p275 = pneg %p117
      %p276 = pneg %p114
      %p277 = pneg %p143
      %p278 = pneg %p140
      %p279 = scmp.lt.s32.totalorder %s18, 1
      %s280 = scalar_select %p279, %s18, 1
      %s281 = smul.addr %s280, 8
      %s282 = smul.addr %s281, 2
      %s283 = scalar_lea.vmem %s4, %s282
      %p284 = pneg %p169
      %p285 = pneg %p166
      %p286 = scmp.lt.s32.totalorder %s18, 1
      %s287 = scalar_select %p286, %s18, 1
      %s288 = smul.addr %s287, 2
      %s289 = scalar_lea.vmem %s5, %s288
      %p290 = pneg %p195
      %p291 = pneg %p192
      %p292 = scmp.lt.s32.totalorder %s18, 1
      %s293 = scalar_select %p292, %s18, 1
      %s294 = smul.addr %s293, 2
      %s295 = scalar_lea.vmem %s6, %s294
      %p296 = scmp.lt.s32.totalorder %s18, 1
      %s297 = scalar_select %p296, %s18, 1
      %s298 = smul.addr %s297, 8
      %s299 = smul.addr %s298, 2
      %s300 = scalar_lea.vmem %s0, %s299
      %p301 = scmp.lt.s32.totalorder %s18, 1
      %s302 = scalar_select %p301, %s18, 1
      %s303 = smul.addr %s302, 4
      %s304 = smul.addr %s303, 4
      %s305 = scalar_lea.vmem %s1, %s304
      %p306 = scmp.lt.s32.totalorder %s18, 1
      %s307 = scalar_select %p306, %s18, 1
      %s308 = smul.addr %s307, 2
      %s309 = scalar_lea.vmem %s2, %s308
      %p310 = scmp.lt.s32.totalorder %s18, 1
      %s311 = scalar_select %p310, %s18, 1
      %s312 = smul.addr %s311, 2
      %s313 = scalar_lea.vmem %s3, %s312
      %p314 = scmp.lt.s32.totalorder %s18, 1
      %s315 = scalar_select %p314, %s18, 1
      %s316 = smul.addr %s315, 8
      %s317 = smul.addr %s316, 2
      %s318 = scalar_lea.vmem %s4, %s317
      %p319 = scmp.lt.s32.totalorder %s18, 1
      %s320 = scalar_select %p319, %s18, 1
      %s321 = smul.addr %s320, 2
      %s322 = scalar_lea.vmem %s5, %s321
      %p323 = scmp.lt.s32.totalorder %s18, 1
      %s324 = scalar_select %p323, %s18, 1
      %s325 = smul.addr %s324, 2
      %s326 = scalar_lea.vmem %s6, %s325
      %p328 = scmp.eq.s32.totalorder %s18, 1
      %v329 = vld [vmem:[%s305] sm:$0xf]
      %v330 = vld [vmem:[%s305 + $0x4] sm:$0xf]
      %v331 = vld [vmem:[%s305 + $0x8] sm:$0xf]
      %v332 = vld [vmem:[%s305 + $0xc] sm:$0xf]
      %v333 = vld [vmem:[%s309] sm:$0x3]
      %v334 = vld [vmem:[%s313] sm:$0x3]
      loop: start=0, step=1, limit=8
      $region37: #{encoder_forward.2} parent=35 // loop_pre_header
        _
      $region38: #{encoder_forward.2} parent=35 // loop_header
        %s336 = sphi 0, %s340
        %p337 = scmp.ge.s32.totalorder %s336, 8
        %v341 = vphi %v333, %v436
        %v342 = vphi %v334, %v443
      $region39: #{encoder_forward.2} parent=35 // loop_header_branch
        %339 = sbr.rel (%p337) target = $region43
      $region40: #{encoder_forward.2} parent=35 // loop_body
        %s343 = ssub.s32 7, %s336
        %s344 = scalar_select %p328, %s343, %s336
        %s345 = smul.u32 %s344, 2
        %s346 = scalar_lea.vmem %s300, %s345
        %v347 = vld [vmem:[%s346] sm:$0x3]
        %v348 = vpack.c.bf16 %v341, %v341
        %v353 = vunpack.c.l.b16 %v329
        %v354 = vunpack.c.l.b16 %v330
        %v355 = vunpack.c.l.b16 %v331
        %v356 = vunpack.c.l.b16 %v332
        %v357 = vpack.c.b16 %v354, %v353
        %v358 = vpack.c.b16 %v356, %v355
        %vm361 = vcmask 261120
        %v363 = vsel %vm361, %v348, 0
        %365 = vmatprep.subr.bf16.mxu0 0
        %366 = vmatpush1.bf16.msra.mxu0 0
        %367 = vmatprep.subr.bf16.mxu0 0
        %368 = vmatpush1.bf16.msra.mxu0 0
        %369 = vmatprep.subr.bf16.mxu0 0
        %370 = vmatpush1.bf16.msra.mxu0 0
        %371 = vmatprep.subr.bf16.mxu0 0
        %372 = vmatpush1.bf16.msra.mxu0 0
        %373 = vmatprep.subr.bf16.mxu0 0
        %374 = vmatpush1.bf16.msra.mxu0 0
        %375 = vmatprep.subr.bf16.mxu0 0
        %376 = vmatpush1.bf16.msra.mxu0 0
        %377 = vmatprep.subr.bf16.mxu0 0
        %378 = vmatpush1.bf16.msra.mxu0 %v358
        %379 = vmatprep.subr.bf16.mxu0 0
        %380 = vmatpush1.bf16.msra.mxu0 %v357
        %381 = vmatprep.subr.bf16.mxu0 0
        %382 = vmatpush2.bf16.msra.mxu0 0
        %383 = vmatprep.subr.bf16.mxu0 0
        %384 = vmatpush2.bf16.msra.mxu0 0
        %385 = vmatprep.subr.bf16.mxu0 0
        %386 = vmatpush2.bf16.msra.mxu0 0
        %387 = vmatprep.subr.bf16.mxu0 0
        %388 = vmatpush2.bf16.msra.mxu0 0
        %389 = vmatprep.subr.bf16.mxu0 0
        %390 = vmatpush2.bf16.msra.mxu0 0
        %391 = vmatprep.subr.bf16.mxu0 0
        %392 = vmatpush2.bf16.msra.mxu0 0
        %393 = vmatprep.subr.bf16.mxu0 0
        %394 = vmatpush2.bf16.msra.mxu0 0
        %395 = vmatprep.subr.bf16.mxu0 0
        %396 = vmatpush2.bf16.msra.mxu0 0
        %397 = vmatprep.mubr.bf16.mxu0 0
        %398 = vmatmul.mubr.bf16.gmra.mxu0 %v363
        %v399 = vpop.f32.mrf.mxu0
        %v400 = vadd.f32 0.0, %v399
        %v401 = vpop.f32.mrf.mxu0
        %v402 = vpop.f32.mrf.mxu0
        %v403 = vpop.f32.mrf.mxu0
        %404 = vdwg.mxu0
        %v405 = vadd.f32 %v347, %v400
        %v406 = vxor.u32 %v405, 2147483648
        %v407 = vmul.f32 %v406, 1.442695
        %v408 = vpow.pop %v407
        %v409 = vadd.f32 %v408, 1.0
        %v410 = vrcp.pop %v409
        %v411 = vmul.f32 1.0, %v410
        %v412 = vtanh.pop %v405
        %414 = vrot.lane.b32.xlu0 %v342, 32
        %v415 = vpop.permute.xlu0 %414
        %v417 = vmul.f32 %v411, %v415
        %419 = vrot.lane.b32.xlu0 %v412, 64
        %v420 = vpop.permute.xlu0 %419
        %v422 = vmul.f32 %v411, %v420
        %424 = vrot.lane.b32.xlu0 %v422, 32
        %v425 = vpop.permute.xlu0 %424
        %v427 = vadd.f32 %v417, %v425
        %v428 = vtanh.pop %v427
        %430 = vrot.lane.b32.xlu0 %v428, 64
        %v431 = vpop.permute.xlu0 %430
        %v433 = vmul.f32 %v411, %v431
        %435 = vrot.lane.b32.xlu0 %v433, 32
        %v436 = vpop.permute.xlu0 %435
        %s438 = scalar_lea.vmem %s318, %s345
        %vm439 = vcmask 254976
        %440 = vst.msk [vmem:[%s438] sm:$0x3] %vm439, %v436
        %442 = vrot.lane.b32.xlu0 %v427, 96
        %v443 = vpop.permute.xlu0 %442
      $region41: #{encoder_forward.2} parent=35 // loop_footer
        %s340 = sadd.s32 1, %s336
      $region42: #{encoder_forward.2} parent=35 // loop_footer_branch
        %335 = sbr.rel target = $region38
      $region43: #{encoder_forward.2} parent=35 // loop_exit
        _
      %vm445 = vcmask 254976
      %446 = vst.msk [vmem:[%s322] sm:$0x3] %vm445, %v341
      %447 = vst.msk [vmem:[%s326] sm:$0x3] %vm445, %v342
      %p448 = scmp.lt.s32.totalorder %s18, 1
      %s449 = scalar_select %p448, %s18, 1
      %s450 = smul.addr %s449, 8
      %s451 = smul.addr %s450, 2
      %s452 = scalar_lea.vmem %s4, %s451
      %p453 = scmp.lt.s32.totalorder %s18, 1
      %s454 = scalar_select %p453, %s18, 1
      %s455 = smul.addr %s454, 2
      %s456 = scalar_lea.vmem %s5, %s455
      %p457 = scmp.lt.s32.totalorder %s18, 1
      %s458 = scalar_select %p457, %s18, 1
      %s459 = smul.addr %s458, 2
      %s460 = scalar_lea.vmem %s6, %s459
      // Predicated region
      $region44: #{encoder_forward.2} parent=35 // pred_check
        %p461 = pneg %p140
      $region45: #{encoder_forward.2} parent=35 // pred_check_branch
        %463 = sbr.rel (%p461) target = $region47
      $region46: #{encoder_forward.2} parent=35 // pred_region
        _
      $region47: #{encoder_forward.2} parent=35 // pred_fallthru
        _
      // Predicated region
      $region48: #{encoder_forward.2} parent=35 // pred_check
        %p464 = pneg %p166
      $region49: #{encoder_forward.2} parent=35 // pred_check_branch
        %466 = sbr.rel (%p464) target = $region51
      $region50: #{encoder_forward.2} parent=35 // pred_region
        _
      $region51: #{encoder_forward.2} parent=35 // pred_fallthru
        _
      // Predicated region
      $region52: #{encoder_forward.2} parent=35 // pred_check
        %p467 = pneg %p192
      $region53: #{encoder_forward.2} parent=35 // pred_check_branch
        %469 = sbr.rel (%p467) target = $region55
      $region54: #{encoder_forward.2} parent=35 // pred_region
        _
      $region55: #{encoder_forward.2} parent=35 // pred_fallthru
        _
    $region36: #{encoder_forward.2} parent=5 // pred_fallthru
      _
    %p470 = scmp.le.s32.totalorder 2, %s13
    // Predicated region
    $region56: #{encoder_forward.2} parent=5 // pred_check
      %p471 = pneg %p470
    $region57: #{encoder_forward.2} parent=5 // pred_check_branch
      %473 = sbr.rel (%p471) target = $region59
    $region58: #{encoder_forward.2} parent=5 // pred_region
      %s474 = ssub.s32 %s13, 2
      // Predicated region
      $region60: #{encoder_forward.2} parent=58 // pred_check
        %p475 = pneg %p146
      $region61: #{encoder_forward.2} parent=58 // pred_check_branch
        %477 = sbr.rel (%p475) target = $region63
      $region62: #{encoder_forward.2} parent=58 // pred_region
        %p478 = scmp.lt.s32.totalorder %s19, 1
        %s479 = scalar_select %p478, %s19, 1
        %s480 = smul.addr %s479, 8
        %s481 = smul.addr %s480, 2
        %s482 = scalar_lea.vmem %s4, %s481
      $region63: #{encoder_forward.2} parent=58 // pred_fallthru
        _
      // Predicated region
      $region64: #{encoder_forward.2} parent=58 // pred_check
        %p483 = pneg %p172
      $region65: #{encoder_forward.2} parent=58 // pred_check_branch
        %485 = sbr.rel (%p483) target = $region67
      $region66: #{encoder_forward.2} parent=58 // pred_region
        %p486 = scmp.lt.s32.totalorder %s19, 1
        %s487 = scalar_select %p486, %s19, 1
        %s488 = smul.addr %s487, 2
        %s489 = scalar_lea.vmem %s5, %s488
      $region67: #{encoder_forward.2} parent=58 // pred_fallthru
        _
      // Predicated region
      $region68: #{encoder_forward.2} parent=58 // pred_check
        %p490 = pneg %p198
      $region69: #{encoder_forward.2} parent=58 // pred_check_branch
        %492 = sbr.rel (%p490) target = $region71
      $region70: #{encoder_forward.2} parent=58 // pred_region
        %p493 = scmp.lt.s32.totalorder %s19, 1
        %s494 = scalar_select %p493, %s19, 1
        %s495 = smul.addr %s494, 2
        %s496 = scalar_lea.vmem %s6, %s495
      $region71: #{encoder_forward.2} parent=58 // pred_fallthru
        _
    $region59: #{encoder_forward.2} parent=5 // pred_fallthru
      _
  $region6: #{encoder_forward.2} parent=0 // loop_footer
    %s17 = sadd.s32 1, %s13
  $region7: #{encoder_forward.2} parent=0 // loop_footer_branch
    %12 = sbr.rel target = $region3
  $region8: #{encoder_forward.2} parent=0 // loop_exit
    _

</llo_original>
